<compile_context>
chip_gen: v7x
topology: tpu7x:2x2x1
jax: 0.10.0
libtpu: 0.0.40
codegen_flags: <defaults>
</compile_context>

<pallas_src>
import functools

import jax
import jax.numpy as jnp
from jax.experimental import pallas as pl
from jax.experimental.pallas import tpu as pltpu


LANE = 128     # TPU lane width (last dim)
SUBLANE = 8    # TPU sublane width (second-to-last dim)


def _round_up(n, m):
    return ((n + m - 1) // m) * m


def mlp_kernel(x_ref, w1_ref, b1_ref, w2_ref, b2_ref, o_ref):
    # x_ref : (TB, Ip)   w1_ref : (Ip, Hp)   b1_ref : (1, Hp)  [f32]
    # w2_ref: (Hp, Op)   b2_ref : (1, Op)    o_ref  : (TB, Op) [f32]
    x = x_ref[...]

    # fc1: MXU matmul with f32 accumulation; bias add + sigmoid in f32 (VPU/EUP).
    z1 = jnp.dot(x, w1_ref[...], preferred_element_type=jnp.float32) + b1_ref[...]
    h = jax.nn.sigmoid(z1)

    # fc2: feed the MXU in the compute dtype (bf16 on v6e/v7x), accumulate f32.
    z2 = jnp.dot(h.astype(w2_ref.dtype), w2_ref[...],
                 preferred_element_type=jnp.float32) + b2_ref[...]
    o_ref[...] = jax.nn.sigmoid(z2).astype(o_ref.dtype)


def prepare_params(w1, b1, w2, b2, *, compute_dtype=jnp.float32):
    """One-time parameter prep, hoisted out of the forward path.

    - transposes PyTorch (out_features, in_features) weights to (in, out),
    - zero-pads feature dims to lane (128) multiples,
    - casts weights to the compute dtype (bf16 recommended on v6e/v7x),
      biases stay f32 since elementwise math is done in f32.
    """
    H, I = w1.shape
    O, _ = w2.shape
    Ip, Hp, Op = _round_up(I, LANE), _round_up(H, LANE), _round_up(O, LANE)

    w1_t = jnp.zeros((Ip, Hp), jnp.float32).at[:I, :H].set(
        jnp.asarray(w1, jnp.float32).T)
    w2_t = jnp.zeros((Hp, Op), jnp.float32).at[:H, :O].set(
        jnp.asarray(w2, jnp.float32).T)
    b1_p = jnp.zeros((1, Hp), jnp.float32).at[0, :H].set(
        jnp.asarray(b1, jnp.float32))
    b2_p = jnp.zeros((1, Op), jnp.float32).at[0, :O].set(
        jnp.asarray(b2, jnp.float32))

    params = (w1_t.astype(compute_dtype), b1_p, w2_t.astype(compute_dtype), b2_p)
    return params, (I, H, O)


@functools.partial(jax.jit, static_argnames=("out_features", "batch_tile"))
def neural_net_forward(x, params, out_features, batch_tile=512):
    """Forward pass. `params` comes from prepare_params (already transposed/padded)."""
    w1_t, b1_p, w2_t, b2_p = params
    B, I = x.shape
    Ip, Hp = w1_t.shape
    Op = w2_t.shape[1]
    compute_dtype = w1_t.dtype
    itemsize = jnp.dtype(compute_dtype).itemsize

    # Batch tile: sublane-aligned, batch padded to a whole number of tiles.
    tb = _round_up(min(batch_tile, _round_up(B, SUBLANE)), SUBLANE)
    Bp = _round_up(B, tb)
    grid = (Bp // tb,)

    # Pad x (rows -> Bp, cols -> Ip) and cast to the compute dtype.
    x_p = jnp.zeros((Bp, Ip), compute_dtype).at[:B, :I].set(
        x.astype(compute_dtype))

    # VMEM budget: double-buffered x / out tiles + resident weights + headroom.
    vmem_bytes = (2 * tb * Ip * itemsize          # x tiles (double-buffered)
                  + 2 * tb * Op * 4               # out tiles (f32)
                  + (Ip * Hp + Hp * Op) * itemsize  # resident weights
                  + (Hp + Op) * 4                 # biases
                  + (4 << 20))                    # headroom for intermediates
    vmem_bytes = int(min(max(vmem_bytes, 16 << 20), 64 << 20))

    cost = pl.CostEstimate(
        flops=2 * Bp * (Ip * Hp + Hp * Op),
        transcendentals=Bp * (Hp + Op),
        bytes_accessed=(x_p.size * itemsize
                        + (w1_t.size + w2_t.size) * itemsize
                        + (b1_p.size + b2_p.size) * 4
                        + Bp * Op * 4),
    )

    out_p = pl.pallas_call(
        mlp_kernel,
        out_shape=jax.ShapeDtypeStruct((Bp, Op), jnp.float32),
        grid_spec=pltpu.PrefetchScalarGridSpec(
            num_scalar_prefetch=0,
            grid=grid,
            in_specs=[
                pl.BlockSpec((tb, Ip), lambda i: (i, 0)),   # x: streams over batch
                pl.BlockSpec((Ip, Hp), lambda i: (0, 0)),   # W1: resident in VMEM
                pl.BlockSpec((1, Hp), lambda i: (0, 0)),    # b1: resident
                pl.BlockSpec((Hp, Op), lambda i: (0, 0)),   # W2: resident
                pl.BlockSpec((1, Op), lambda i: (0, 0)),    # b2: resident
            ],
            out_specs=pl.BlockSpec((tb, Op), lambda i: (i, 0)),
        ),
        compiler_params=pltpu.CompilerParams(
            dimension_semantics=("parallel",),   # independent batch tiles (v7x 2 TCs)
            vmem_limit_bytes=vmem_bytes,
        ),
        cost_estimate=cost,
    )(x_p, w1_t, b1_p, w2_t, b2_p)

    # Strip batch and output-feature padding.
    return out_p[:B, :out_features]


def init_linear_params(key, out_features, in_features):
    """Deterministic init mimicking PyTorch nn.Linear default:
    U(-1/sqrt(fan_in), 1/sqrt(fan_in)) for both weight and bias."""
    kw, kb = jax.random.split(key)
    bound = 1.0 / jnp.sqrt(jnp.float32(in_features))
    w = jax.random.uniform(kw, (out_features, in_features), jnp.float32,
                           minval=-bound, maxval=bound)
    b = jax.random.uniform(kb, (out_features,), jnp.float32,
                           minval=-bound, maxval=bound)
    return w, b


if __name__ == "__main__":
    # Small, deterministic example consistent with NeuralNet(input, hidden, output)
    batch = 8
    input_count = 16
    hidden_count = 32
    output_count = 8

    key = jax.random.PRNGKey(0)
    kx, k1, k2, kx2 = jax.random.split(key, 4)

    x = jax.random.normal(kx, (batch, input_count), jnp.float32)
    w1, b1 = init_linear_params(k1, hidden_count, input_count)
    w2, b2 = init_linear_params(k2, output_count, hidden_count)

    def reference(xv):
        return jax.nn.sigmoid(jax.nn.sigmoid(xv @ w1.T + b1) @ w2.T + b2)

    # --- f32 compute path (exact vs reference) ------------------------------
    params_f32, _ = prepare_params(w1, b1, w2, b2, compute_dtype=jnp.float32)
    out = neural_net_forward(x, params_f32, output_count)
    out = jax.block_until_ready(out)
    assert out.shape == (batch, output_count)
    assert jnp.allclose(out, reference(x), atol=1e-5, rtol=1e-5)

    # --- larger, non-multiple batch: exercises batch tiling + padding -------
    x_big = jax.random.normal(kx2, (300, input_count), jnp.float32)
    out_big = neural_net_forward(x_big, params_f32, output_count, batch_tile=128)
    out_big = jax.block_until_ready(out_big)
    assert out_big.shape == (300, output_count)
    assert jnp.allclose(out_big, reference(x_big), atol=1e-5, rtol=1e-5)

    # --- bf16 compute path (v6e/v7x HBM-traffic optimization), f32 accum ----
    params_bf16, _ = prepare_params(w1, b1, w2, b2, compute_dtype=jnp.bfloat16)
    out_bf16 = neural_net_forward(x, params_bf16, output_count)
    out_bf16 = jax.block_until_ready(out_bf16)
    assert jnp.allclose(out_bf16, reference(x), atol=3e-2, rtol=3e-2)

    print("KERNEL_OK")
</pallas_src>

<mosaic_0001>
module attributes {stable_mosaic.version = 11 : i64} {
  func.func @mlp_kernel(%arg0: i32, %arg1: memref<8x128xf32, #tpu.memory_space<vmem>>, %arg2: memref<128x128xf32, #tpu.memory_space<vmem>>, %arg3: memref<1x128xf32, #tpu.memory_space<vmem>>, %arg4: memref<128x128xf32, #tpu.memory_space<vmem>>, %arg5: memref<1x128xf32, #tpu.memory_space<vmem>>, %arg6: memref<8x128xf32, #tpu.memory_space<vmem>>) attributes {dimension_semantics = [#tpu.dimension_semantics<parallel>], iteration_bounds = array<i64: 1>, scalar_prefetch = 0 : i64, scratch_operands = 0 : i64, tpu.core_type = #tpu.core_type<tc>, window_params = [{transform_indices = @transform_0, window_bounds = array<i64: 8, 128>}, {pipeline_mode = #tpu.pipeline_mode<synchronous>, transform_indices = @transform_1, window_bounds = array<i64: 128, 128>}, {pipeline_mode = #tpu.pipeline_mode<synchronous>, transform_indices = @transform_2, window_bounds = array<i64: 1, 128>}, {pipeline_mode = #tpu.pipeline_mode<synchronous>, transform_indices = @transform_3, window_bounds = array<i64: 128, 128>}, {pipeline_mode = #tpu.pipeline_mode<synchronous>, transform_indices = @transform_4, window_bounds = array<i64: 1, 128>}, {transform_indices = @transform_5, window_bounds = array<i64: 8, 128>}]} {
    %c0 = arith.constant 0 : index
    %c0_0 = arith.constant 0 : index
    %0 = vector.load %arg1[%c0, %c0_0] : memref<8x128xf32, #tpu.memory_space<vmem>>, vector<8x128xf32>
    %c0_1 = arith.constant 0 : index
    %c0_2 = arith.constant 0 : index
    %1 = vector.load %arg2[%c0_1, %c0_2] : memref<128x128xf32, #tpu.memory_space<vmem>>, vector<128x128xf32>
    %cst = arith.constant dense<0.000000e+00> : vector<8x128xf32>
    %2 = tpu.matmul %0, %1, %cst {dimension_numbers = #tpu.dot_dimension_numbers<[1], [0], [0], [1], [0, 0, 1, 1], [], []>} : vector<8x128xf32>, vector<128x128xf32>, vector<8x128xf32> -> vector<8x128xf32>
    %c0_3 = arith.constant 0 : index
    %c0_4 = arith.constant 0 : index
    %3 = vector.load %arg3[%c0_3, %c0_4] : memref<1x128xf32, #tpu.memory_space<vmem>>, vector<1x128xf32>
    %4 = vector.broadcast %3 : vector<1x128xf32> to vector<8x128xf32>
    %5 = arith.addf %2, %4 : vector<8x128xf32>
    %6 = arith.negf %5 : vector<8x128xf32>
    %7 = math.exp %6 : vector<8x128xf32>
    %cst_5 = arith.constant 1.000000e+00 : f32
    %8 = vector.broadcast %cst_5 : f32 to vector<8x128xf32>
    %9 = arith.addf %8, %7 : vector<8x128xf32>
    %10 = arith.divf %8, %9 : vector<8x128xf32>
    %c0_6 = arith.constant 0 : index
    %c0_7 = arith.constant 0 : index
    %11 = vector.load %arg4[%c0_6, %c0_7] : memref<128x128xf32, #tpu.memory_space<vmem>>, vector<128x128xf32>
    %cst_8 = arith.constant dense<0.000000e+00> : vector<8x128xf32>
    %12 = tpu.matmul %10, %11, %cst_8 {dimension_numbers = #tpu.dot_dimension_numbers<[1], [0], [0], [1], [0, 0, 1, 1], [], []>} : vector<8x128xf32>, vector<128x128xf32>, vector<8x128xf32> -> vector<8x128xf32>
    %c0_9 = arith.constant 0 : index
    %c0_10 = arith.constant 0 : index
    %13 = vector.load %arg5[%c0_9, %c0_10] : memref<1x128xf32, #tpu.memory_space<vmem>>, vector<1x128xf32>
    %14 = vector.broadcast %13 : vector<1x128xf32> to vector<8x128xf32>
    %15 = arith.addf %12, %14 : vector<8x128xf32>
    %16 = arith.negf %15 : vector<8x128xf32>
    %17 = math.exp %16 : vector<8x128xf32>
    %cst_11 = arith.constant 1.000000e+00 : f32
    %18 = vector.broadcast %cst_11 : f32 to vector<8x128xf32>
    %19 = arith.addf %18, %17 : vector<8x128xf32>
    %20 = arith.divf %18, %19 : vector<8x128xf32>
    %c0_12 = arith.constant 0 : index
    %c0_13 = arith.constant 0 : index
    %21 = vector.load %arg6[%c0_12, %c0_13] : memref<8x128xf32, #tpu.memory_space<vmem>>, vector<8x128xf32>
    tpu.vector_store %arg6[%c0_12, %c0_13], %20 {strides = array<i32>} : memref<8x128xf32, #tpu.memory_space<vmem>>, vector<8x128xf32>,
    return
  }
  func.func @transform_0(%arg0: i32) -> (i32, i32) {
    %c0_i32 = arith.constant 0 : i32
    %c0_i32_0 = arith.constant 0 : i32
    return %arg0, %c0_i32 : i32, i32
  }
  func.func @transform_1(%arg0: i32) -> (i32, i32) {
    %c0_i32 = arith.constant 0 : i32
    %c0_i32_0 = arith.constant 0 : i32
    %c0_i32_1 = arith.constant 0 : i32
    return %c0_i32, %c0_i32_0 : i32, i32
  }
  func.func @transform_2(%arg0: i32) -> (i32, i32) {
    %c0_i32 = arith.constant 0 : i32
    %c0_i32_0 = arith.constant 0 : i32
    %c0_i32_1 = arith.constant 0 : i32
    return %c0_i32, %c0_i32_0 : i32, i32
  }
  func.func @transform_3(%arg0: i32) -> (i32, i32) {
    %c0_i32 = arith.constant 0 : i32
    %c0_i32_0 = arith.constant 0 : i32
    %c0_i32_1 = arith.constant 0 : i32
    return %c0_i32, %c0_i32_0 : i32, i32
  }
  func.func @transform_4(%arg0: i32) -> (i32, i32) {
    %c0_i32 = arith.constant 0 : i32
    %c0_i32_0 = arith.constant 0 : i32
    %c0_i32_1 = arith.constant 0 : i32
    return %c0_i32, %c0_i32_0 : i32, i32
  }
  func.func @transform_5(%arg0: i32) -> (i32, i32) {
    %c0_i32 = arith.constant 0 : i32
    %c0_i32_0 = arith.constant 0 : i32
    return %arg0, %c0_i32 : i32, i32
  }
}

</mosaic_0001>

<llo_original>
// kernel: neural_net_forward.1
$region0: #{neural_net_forward.1}
  #allocation0 [shape = 'u32[]', space=smem, size = 0x4, offset = 0x4, fixed_abs, tag = 'smem constant byte address 0x4 - core index']
  #allocation1 [shape = 'u32[144,128]{1,0:T(1,128)}', space=vmem, size = 0x12000, scoped, tag = 'internal scratch']
  %s0 = inlined_call_operand.vmem [shape: f32[8,128], index: 0, kind: input, shape index: {}]
  %s1 = inlined_call_operand.hbm [shape: f32[128,128], index: 1, kind: input, shape index: {}]
  %s2 = inlined_call_operand.vmem [shape: f32[1,128], index: 2, kind: input, shape index: {}]
  %s3 = inlined_call_operand.hbm [shape: f32[128,128], index: 3, kind: input, shape index: {}]
  %s4 = inlined_call_operand.vmem [shape: f32[1,128], index: 4, kind: input, shape index: {}]
  %s5 = inlined_call_operand.hbm [shape: f32[8,128], index: 5, kind: output, shape index: {}]
  %s6 = sld [smem:[#allocation0]]
  $region38: #{neural_net_forward.1} parent=0
    _
  %s8 = ssub.s32 1, %s6
  %s9 = scalar_select 0, %s8, %s6
  $region1: #{neural_net_forward.1} parent=0
    #allocation2 [shape = 'u8[65536]{0}', space=vmem, size = 0x10000, scoped, tag = 'input window, operand 1, single buffered']
    #allocation3 [shape = 's32[1]{0}', space=sflag, size = 0x4, scoped, tag = 'scoped memory for neural_net_forward.1']
    #allocation4 [shape = 's32[1]{0}', space=sflag, size = 0x4, scoped, tag = 'scoped memory for neural_net_forward.1']
    #allocation5 [shape = 'u8[65536]{0}', space=vmem, size = 0x10000, scoped, tag = 'input window, operand 3, single buffered']
    #allocation6 [shape = 's32[1]{0}', space=sflag, size = 0x4, scoped, tag = 'scoped memory for neural_net_forward.1']
    #allocation7 [shape = 'u8[4096]{0}', space=vmem, size = 0x1000, scoped, tag = 'output window, operand 0, single buffered']
    %10 = vsyncpa [#allocation3], 0
    %11 = vsyncpa [#allocation6], 0
    %12 = vsyncpa [#allocation4], 0
    // Predicated region
    $region2: #{neural_net_forward.1} parent=1 // pred_check
      _
    $region3: #{neural_net_forward.1} parent=1 // pred_check_branch
      %14 = sbr.rel (0) target = $region5
    $region4: #{neural_net_forward.1} parent=1 // pred_region
      _
    $region5: #{neural_net_forward.1} parent=1 // pred_fallthru
      _
    // Predicated region
    $region6: #{neural_net_forward.1} parent=1 // pred_check
      _
    $region7: #{neural_net_forward.1} parent=1 // pred_check_branch
      %16 = sbr.rel (0) target = $region9
    $region8: #{neural_net_forward.1} parent=1 // pred_region
      %s18 = ssub.s32 2048, 2048
      %19 = vsyncadd [#allocation3], %s18
      %s20 = sshll.u32 [#allocation2], 4
      %s21 = int_to_ptr.vmem [resolvable:$true] %s20
      %26 = dma.hbm_to_vmem [thread:$0]  %s1, 2048, %s21, [#allocation3], 128, 128, 8
    $region9: #{neural_net_forward.1} parent=1 // pred_fallthru
      _
    // Predicated region
    $region10: #{neural_net_forward.1} parent=1 // pred_check
      _
    $region11: #{neural_net_forward.1} parent=1 // pred_check_branch
      %28 = sbr.rel (0) target = $region13
    $region12: #{neural_net_forward.1} parent=1 // pred_region
      _
    $region13: #{neural_net_forward.1} parent=1 // pred_fallthru
      _
    // Predicated region
    $region14: #{neural_net_forward.1} parent=1 // pred_check
      _
    $region15: #{neural_net_forward.1} parent=1 // pred_check_branch
      %30 = sbr.rel (0) target = $region17
    $region16: #{neural_net_forward.1} parent=1 // pred_region
      %s32 = ssub.s32 2048, 2048
      %33 = vsyncadd [#allocation6], %s32
      %s34 = sshll.u32 [#allocation5], 4
      %s35 = int_to_ptr.vmem [resolvable:$true] %s34
      %40 = dma.hbm_to_vmem [thread:$0]  %s3, 2048, %s35, [#allocation6], 128, 128, 8
    $region17: #{neural_net_forward.1} parent=1 // pred_fallthru
      _
    // Predicated region
    $region18: #{neural_net_forward.1} parent=1 // pred_check
      _
    $region19: #{neural_net_forward.1} parent=1 // pred_check_branch
      %42 = sbr.rel (0) target = $region21
    $region20: #{neural_net_forward.1} parent=1 // pred_region
      _
    $region21: #{neural_net_forward.1} parent=1 // pred_fallthru
      _
    // Predicated region
    $region22: #{neural_net_forward.1} parent=1 // pred_check
      _
    $region23: #{neural_net_forward.1} parent=1 // pred_check_branch
      %44 = sbr.rel (0) target = $region25
    $region24: #{neural_net_forward.1} parent=1 // pred_region
      %45 = dma.done [#allocation3], 2048
    $region25: #{neural_net_forward.1} parent=1 // pred_fallthru
      _
    // Predicated region
    $region26: #{neural_net_forward.1} parent=1 // pred_check
      _
    $region27: #{neural_net_forward.1} parent=1 // pred_check_branch
      %47 = sbr.rel (0) target = $region29
    $region28: #{neural_net_forward.1} parent=1 // pred_region
      %48 = dma.done [#allocation6], 2048
    $region29: #{neural_net_forward.1} parent=1 // pred_fallthru
      _
    %v49 = vld [vmem:[%s0] sm:$0xff]
    %v50 = vld [vmem:[#allocation2] sm:$0xff]
    %v51 = vld [vmem:[#allocation2 + $0x8] sm:$0xff]
    %v52 = vld [vmem:[#allocation2 + $0x10] sm:$0xff]
    %v53 = vld [vmem:[#allocation2 + $0x18] sm:$0xff]
    %v54 = vld [vmem:[#allocation2 + $0x20] sm:$0xff]
    %v55 = vld [vmem:[#allocation2 + $0x28] sm:$0xff]
    %v56 = vld [vmem:[#allocation2 + $0x30] sm:$0xff]
    %v57 = vld [vmem:[#allocation2 + $0x38] sm:$0xff]
    %v58 = vld [vmem:[#allocation2 + $0x40] sm:$0xff]
    %v59 = vld [vmem:[#allocation2 + $0x48] sm:$0xff]
    %v60 = vld [vmem:[#allocation2 + $0x50] sm:$0xff]
    %v61 = vld [vmem:[#allocation2 + $0x58] sm:$0xff]
    %v62 = vld [vmem:[#allocation2 + $0x60] sm:$0xff]
    %v63 = vld [vmem:[#allocation2 + $0x68] sm:$0xff]
    %v64 = vld [vmem:[#allocation2 + $0x70] sm:$0xff]
    %v65 = vld [vmem:[#allocation2 + $0x78] sm:$0xff]
    %v66 = vld [vmem:[%s2] sm:$0x1]
    %v68 = vlaneseq
    %v69 = vshrl.u32 %v68, 7
    %v70 = vsub.s32 0, %v69
    %v71 = vrot.slane %v66, %v70
    %73 = vmatprep.subr.mxu0 0.0
    %74 = vmatpush1.msra.mxu0 %v50
    %75 = vmatprep.subr.mxu0 0.0
    %76 = vmatpush1.msra.mxu0 %v51
    %77 = vmatprep.subr.mxu0 0.0
    %78 = vmatpush1.msra.mxu0 %v52
    %79 = vmatprep.subr.mxu0 0.0
    %80 = vmatpush1.msra.mxu0 %v53
    %81 = vmatprep.subr.mxu0 0.0
    %82 = vmatpush1.msra.mxu0 %v54
    %83 = vmatprep.subr.mxu0 0.0
    %84 = vmatpush1.msra.mxu0 %v55
    %85 = vmatprep.subr.mxu0 0.0
    %86 = vmatpush1.msra.mxu0 %v56
    %87 = vmatprep.subr.mxu0 0.0
    %88 = vmatpush1.msra.mxu0 %v57
    %89 = vmatprep.subr.mxu0 0.0
    %90 = vmatpush1.msra.mxu0 %v58
    %91 = vmatprep.subr.mxu0 0.0
    %92 = vmatpush1.msra.mxu0 %v59
    %93 = vmatprep.subr.mxu0 0.0
    %94 = vmatpush1.msra.mxu0 %v60
    %95 = vmatprep.subr.mxu0 0.0
    %96 = vmatpush1.msra.mxu0 %v61
    %97 = vmatprep.subr.mxu0 0.0
    %98 = vmatpush1.msra.mxu0 %v62
    %99 = vmatprep.subr.mxu0 0.0
    %100 = vmatpush1.msra.mxu0 %v63
    %101 = vmatprep.subr.mxu0 0.0
    %102 = vmatpush1.msra.mxu0 %v64
    %103 = vmatprep.subr.mxu0 0.0
    %104 = vmatpush1.msra.mxu0 %v65
    %105 = vmatprep.subr.mxu0 0.0
    %106 = vmatpush1.msra.mxu0 0.0
    %107 = vmatprep.subr.mxu0 0.0
    %108 = vmatpush1.msra.mxu0 0.0
    %109 = vmatprep.subr.mxu0 0.0
    %110 = vmatpush1.msra.mxu0 0.0
    %111 = vmatprep.subr.mxu0 0.0
    %112 = vmatpush1.msra.mxu0 0.0
    %113 = vmatprep.subr.mxu0 0.0
    %114 = vmatpush1.msra.mxu0 0.0
    %115 = vmatprep.subr.mxu0 0.0
    %116 = vmatpush1.msra.mxu0 0.0
    %117 = vmatprep.subr.mxu0 0.0
    %118 = vmatpush1.msra.mxu0 0.0
    %119 = vmatprep.subr.mxu0 0.0
    %120 = vmatpush1.msra.mxu0 0.0
    %121 = vmatprep.subr.mxu0 0.0
    %122 = vmatpush1.msra.mxu0 0.0
    %123 = vmatprep.subr.mxu0 0.0
    %124 = vmatpush1.msra.mxu0 0.0
    %125 = vmatprep.subr.mxu0 0.0
    %126 = vmatpush1.msra.mxu0 0.0
    %127 = vmatprep.subr.mxu0 0.0
    %128 = vmatpush1.msra.mxu0 0.0
    %129 = vmatprep.subr.mxu0 0.0
    %130 = vmatpush1.msra.mxu0 0.0
    %131 = vmatprep.subr.mxu0 0.0
    %132 = vmatpush1.msra.mxu0 0.0
    %133 = vmatprep.subr.mxu0 0.0
    %134 = vmatpush1.msra.mxu0 0.0
    %135 = vmatprep.subr.mxu0 0.0
    %136 = vmatpush1.msra.mxu0 0.0
    %137 = vmatprep.mubr.f32.mxu0 0.0
    %138 = vmatmul.mubr.f32.gmra.mrb[0].mxu0 %v49
    %v139 = vpop.f32.mrb[0].mxu0
    %v140 = vadd.f32 %v71, %v139
    %v141 = vpop.f32.mrb[0].mxu0
    %142 = vdwg.mxu0
    %v143 = vxor.u32 %v140, 2147483648
    %v144 = vmul.f32 %v143, 1.442695
    %v145 = vpow.pop %v144
    %v146 = vadd.f32 %v145, 1.0
    %v147 = vrcp.pop %v146
    %v148 = vmul.f32 1.0, %v147
    %v149 = vld [vmem:[#allocation5] sm:$0xff]
    %v150 = vld [vmem:[#allocation5 + $0x8] sm:$0xff]
    %v151 = vld [vmem:[#allocation5 + $0x10] sm:$0xff]
    %v152 = vld [vmem:[#allocation5 + $0x18] sm:$0xff]
    %v153 = vld [vmem:[#allocation5 + $0x20] sm:$0xff]
    %v154 = vld [vmem:[#allocation5 + $0x28] sm:$0xff]
    %v155 = vld [vmem:[#allocation5 + $0x30] sm:$0xff]
    %v156 = vld [vmem:[#allocation5 + $0x38] sm:$0xff]
    %v157 = vld [vmem:[#allocation5 + $0x40] sm:$0xff]
    %v158 = vld [vmem:[#allocation5 + $0x48] sm:$0xff]
    %v159 = vld [vmem:[#allocation5 + $0x50] sm:$0xff]
    %v160 = vld [vmem:[#allocation5 + $0x58] sm:$0xff]
    %v161 = vld [vmem:[#allocation5 + $0x60] sm:$0xff]
    %v162 = vld [vmem:[#allocation5 + $0x68] sm:$0xff]
    %v163 = vld [vmem:[#allocation5 + $0x70] sm:$0xff]
    %v164 = vld [vmem:[#allocation5 + $0x78] sm:$0xff]
    %v165 = vld [vmem:[%s4] sm:$0x1]
    %v167 = vlaneseq
    %v168 = vshrl.u32 %v167, 7
    %v169 = vsub.s32 0, %v168
    %v170 = vrot.slane %v165, %v169
    %172 = vmatprep.subr.mxu0 0.0
    %173 = vmatpush1.msra.mxu0 %v149
    %174 = vmatprep.subr.mxu0 0.0
    %175 = vmatpush1.msra.mxu0 %v150
    %176 = vmatprep.subr.mxu0 0.0
    %177 = vmatpush1.msra.mxu0 %v151
    %178 = vmatprep.subr.mxu0 0.0
    %179 = vmatpush1.msra.mxu0 %v152
    %180 = vmatprep.subr.mxu0 0.0
    %181 = vmatpush1.msra.mxu0 %v153
    %182 = vmatprep.subr.mxu0 0.0
    %183 = vmatpush1.msra.mxu0 %v154
    %184 = vmatprep.subr.mxu0 0.0
    %185 = vmatpush1.msra.mxu0 %v155
    %186 = vmatprep.subr.mxu0 0.0
    %187 = vmatpush1.msra.mxu0 %v156
    %188 = vmatprep.subr.mxu0 0.0
    %189 = vmatpush1.msra.mxu0 %v157
    %190 = vmatprep.subr.mxu0 0.0
    %191 = vmatpush1.msra.mxu0 %v158
    %192 = vmatprep.subr.mxu0 0.0
    %193 = vmatpush1.msra.mxu0 %v159
    %194 = vmatprep.subr.mxu0 0.0
    %195 = vmatpush1.msra.mxu0 %v160
    %196 = vmatprep.subr.mxu0 0.0
    %197 = vmatpush1.msra.mxu0 %v161
    %198 = vmatprep.subr.mxu0 0.0
    %199 = vmatpush1.msra.mxu0 %v162
    %200 = vmatprep.subr.mxu0 0.0
    %201 = vmatpush1.msra.mxu0 %v163
    %202 = vmatprep.subr.mxu0 0.0
    %203 = vmatpush1.msra.mxu0 %v164
    %204 = vmatprep.subr.mxu0 0.0
    %205 = vmatpush1.msra.mxu0 0.0
    %206 = vmatprep.subr.mxu0 0.0
    %207 = vmatpush1.msra.mxu0 0.0
    %208 = vmatprep.subr.mxu0 0.0
    %209 = vmatpush1.msra.mxu0 0.0
    %210 = vmatprep.subr.mxu0 0.0
    %211 = vmatpush1.msra.mxu0 0.0
    %212 = vmatprep.subr.mxu0 0.0
    %213 = vmatpush1.msra.mxu0 0.0
    %214 = vmatprep.subr.mxu0 0.0
    %215 = vmatpush1.msra.mxu0 0.0
    %216 = vmatprep.subr.mxu0 0.0
    %217 = vmatpush1.msra.mxu0 0.0
    %218 = vmatprep.subr.mxu0 0.0
    %219 = vmatpush1.msra.mxu0 0.0
    %220 = vmatprep.subr.mxu0 0.0
    %221 = vmatpush1.msra.mxu0 0.0
    %222 = vmatprep.subr.mxu0 0.0
    %223 = vmatpush1.msra.mxu0 0.0
    %224 = vmatprep.subr.mxu0 0.0
    %225 = vmatpush1.msra.mxu0 0.0
    %226 = vmatprep.subr.mxu0 0.0
    %227 = vmatpush1.msra.mxu0 0.0
    %228 = vmatprep.subr.mxu0 0.0
    %229 = vmatpush1.msra.mxu0 0.0
    %230 = vmatprep.subr.mxu0 0.0
    %231 = vmatpush1.msra.mxu0 0.0
    %232 = vmatprep.subr.mxu0 0.0
    %233 = vmatpush1.msra.mxu0 0.0
    %234 = vmatprep.subr.mxu0 0.0
    %235 = vmatpush1.msra.mxu0 0.0
    %236 = vmatprep.mubr.f32.mxu0 0.0
    %237 = vmatmul.mubr.f32.gmra.mrb[0].mxu0 %v148
    %v238 = vpop.f32.mrb[0].mxu0
    %v239 = vadd.f32 %v170, %v238
    %v240 = vpop.f32.mrb[0].mxu0
    %241 = vdwg.mxu0
    %v242 = vxor.u32 %v239, 2147483648
    %v243 = vmul.f32 %v242, 1.442695
    %v244 = vpow.pop %v243
    %v245 = vadd.f32 %v244, 1.0
    %v246 = vrcp.pop %v245
    %v247 = vmul.f32 1.0, %v246
    %248 = vst [vmem:[#allocation7] sm:$0xff] %v247
    // Predicated region
    $region30: #{neural_net_forward.1} parent=1 // pred_check
      _
    $region31: #{neural_net_forward.1} parent=1 // pred_check_branch
      %250 = sbr.rel (0) target = $region33
    $region32: #{neural_net_forward.1} parent=1 // pred_region
      %s252 = ssub.s32 128, 128
      %253 = vsyncadd [#allocation4], %s252
      %s255 = sshll.u32 [#allocation7], 4
      %s256 = int_to_ptr.vmem [resolvable:$true] %s255
      %258 = dma.vmem_to_hbm [thread:$0]  %s256, 128, %s5, [#allocation4]
    $region33: #{neural_net_forward.1} parent=1 // pred_fallthru
      _
    // Predicated region
    $region34: #{neural_net_forward.1} parent=1 // pred_check
      _
    $region35: #{neural_net_forward.1} parent=1 // pred_check_branch
      %260 = sbr.rel (0) target = $region37
    $region36: #{neural_net_forward.1} parent=1 // pred_region
      %261 = dma.done [#allocation4], 128
    $region37: #{neural_net_forward.1} parent=1 // pred_fallthru
      _
    %262 = vsyncpa [#allocation3], 1
    %263 = vsyncpa [#allocation6], 1
    %264 = vsyncpa [#allocation4], 1

</llo_original>
